<compile_context>
chip_gen: v7x
topology: tpu7x:2x2x1
jax: 0.10.0
libtpu: 0.0.40
codegen_flags: <defaults>
</compile_context>

<pallas_src>
import functools

import jax
import jax.numpy as jnp
from jax.experimental import pallas as pl
from jax.experimental.pallas import tpu as pltpu

HIDDEN = 24          # already a multiple of 8 -> no hidden-dim padding needed
DEPTH = 6
IN_DIM = 2
OUT_DIM = 2

IN_PAD = 8           # input features padded to one sublane group
OUT_PAD = 8          # output rows padded to one sublane group
LANE = 128           # batch tile must be a multiple of this


def _round_up(n: int, m: int) -> int:
    return ((n + m - 1) // m) * m


def _sigmoid(h):
    # sigmoid(z) = 0.5 * tanh(0.5 z) + 0.5 : one EUP op (tanh) + cheap VPU mul/add,
    # instead of exp + divide (two EUP ops) from jax.nn.sigmoid.
    return 0.5 * jnp.tanh(0.5 * h) + 0.5


def _mlp_kernel(x_ref, w0_ref, wh_ref, wo_ref, bh_ref, bo_ref, o_ref, *, depth: int):
    # x_ref : [IN_PAD, TB]            batch-on-lanes input tile
    # w0_ref: [HIDDEN, IN_PAD]        layer-0 weight (torch [out, in], zero-padded cols)
    # wh_ref: [depth-1, HIDDEN, HIDDEN]
    # wo_ref: [OUT_PAD, HIDDEN]       output weight (zero-padded rows)
    # bh_ref: [depth, HIDDEN, 1]
    # bo_ref: [OUT_PAD, 1]
    # o_ref : [OUT_PAD, TB]
    h = jnp.dot(w0_ref[...], x_ref[...], preferred_element_type=jnp.float32) + bh_ref[0]
    h = _sigmoid(h)
    for i in range(depth - 1):                   # static unroll (depth = 6)
        h = jnp.dot(wh_ref[i], h, preferred_element_type=jnp.float32) + bh_ref[i + 1]
        h = _sigmoid(h)
    out = jnp.dot(wo_ref[...], h, preferred_element_type=jnp.float32) + bo_ref[...]
    o_ref[...] = out.astype(o_ref.dtype)


def pack_params(params, hidden: int = HIDDEN, depth: int = DEPTH):
    """Pack torch-layout (W [out,in], b [out]) pairs into padded, kernel-ready arrays.

    Call once; reuse the result across forward calls (kept out of the jitted path).
    """
    assert len(params) == depth + 1
    w0, _ = params[0]
    w_out, b_out = params[-1]

    w0_p = jnp.zeros((hidden, IN_PAD), jnp.float32).at[:, :IN_DIM].set(
        w0.astype(jnp.float32))
    w_hid = jnp.stack([params[i][0].astype(jnp.float32) for i in range(1, depth)])
    b_hid = jnp.stack([params[i][1].astype(jnp.float32)
                       for i in range(depth)]).reshape(depth, hidden, 1)
    w_out_p = jnp.zeros((OUT_PAD, hidden), jnp.float32).at[:OUT_DIM, :].set(
        w_out.astype(jnp.float32))
    b_out_p = jnp.zeros((OUT_PAD, 1), jnp.float32).at[:OUT_DIM, 0].set(
        b_out.astype(jnp.float32))
    return (w0_p, w_hid, w_out_p, b_hid, b_out_p)


@functools.partial(jax.jit, static_argnames=("block_b", "depth", "prefer_even_blocks"))
def deep_sig_net_forward(x, packed, *, block_b: int = 2048, depth: int = DEPTH,
                         prefer_even_blocks: bool = True):
    """x: [B, 2] float32. packed: output of pack_params(params)."""
    w0, w_hid, w_out, b_hid, b_out = packed
    B = x.shape[0]

    # Batch tiling: lane-multiple tiles, large by default to amortize per-step
    # grid overhead. Prefer an even block count when the batch spans more than
    # one lane group so v7x's two TensorCores both get work.
    bp_min = _round_up(B, LANE)
    tb = min(_round_up(block_b, LANE), bp_min)
    n_blocks = -(-bp_min // tb)
    if prefer_even_blocks and n_blocks == 1 and bp_min > LANE:
        tb = _round_up(-(-bp_min // 2), LANE)
        n_blocks = 2
    Bp = n_blocks * tb

    # Batch-on-lanes input, padded only to [8, Bp] (was [32, Bp]).
    x_pad = jnp.zeros((IN_PAD, Bp), jnp.float32).at[:IN_DIM, :B].set(
        x.astype(jnp.float32).T)

    kernel = functools.partial(_mlp_kernel, depth=depth)

    out_pad = pl.pallas_call(
        kernel,
        out_shape=jax.ShapeDtypeStruct((OUT_PAD, Bp), jnp.float32),
        grid=(n_blocks,),
        in_specs=[
            pl.BlockSpec((IN_PAD, tb), lambda i: (0, i)),       # x tile
            pl.BlockSpec(w0.shape, lambda i: (0, 0)),           # resident weights
            pl.BlockSpec(w_hid.shape, lambda i: (0, 0, 0)),
            pl.BlockSpec(w_out.shape, lambda i: (0, 0)),
            pl.BlockSpec(b_hid.shape, lambda i: (0, 0, 0)),
            pl.BlockSpec(b_out.shape, lambda i: (0, 0)),
        ],
        out_specs=pl.BlockSpec((OUT_PAD, tb), lambda i: (0, i)),
        compiler_params=pltpu.CompilerParams(
            dimension_semantics=("parallel",)),
    )(x_pad, w0, w_hid, w_out, b_hid, b_out)

    return out_pad[:OUT_DIM, :B].T


def init_params(key, hidden: int = HIDDEN, depth: int = DEPTH):
    """PyTorch-style init: U(-1/sqrt(fan_in), 1/sqrt(fan_in)); torch [out, in] layout."""
    params = []
    dims_in = [IN_DIM] + [hidden] * depth
    dims_out = [hidden] * depth + [OUT_DIM]
    for din, dout in zip(dims_in, dims_out):
        key, kw, kb = jax.random.split(key, 3)
        bound = 1.0 / jnp.sqrt(jnp.float32(din))
        w = jax.random.uniform(kw, (dout, din), jnp.float32, -bound, bound)
        b = jax.random.uniform(kb, (dout,), jnp.float32, -bound, bound)
        params.append((w, b))
    return params


def reference_forward(x, params):
    """Pure-JAX reference of the same forward pass (torch layout)."""
    h = x
    for (w, b) in params[:-1]:
        h = jax.nn.sigmoid(h @ w.T + b)
    w, b = params[-1]
    return h @ w.T + b


if __name__ == "__main__":
    key = jax.random.PRNGKey(0)
    key, kx1, kx2 = jax.random.split(key, 3)
    params = init_params(key)
    packed = pack_params(params)   # packed once, outside the per-call path

    # Small case (single 128-lane tile).
    B1 = 8
    x1 = jax.random.normal(kx1, (B1, IN_DIM), jnp.float32)
    out1 = jax.block_until_ready(deep_sig_net_forward(x1, packed))
    ref1 = reference_forward(x1, params)
    assert out1.shape == (B1, OUT_DIM), out1.shape
    assert jnp.allclose(out1, ref1, atol=2e-5, rtol=1e-4), jnp.abs(out1 - ref1).max()

    # Larger, non-multiple batch -> exercises padding + even 2-block grid.
    B2 = 1300
    x2 = jax.random.normal(kx2, (B2, IN_DIM), jnp.float32)
    out2 = jax.block_until_ready(deep_sig_net_forward(x2, packed))
    ref2 = reference_forward(x2, params)
    assert out2.shape == (B2, OUT_DIM), out2.shape
    assert jnp.allclose(out2, ref2, atol=2e-5, rtol=1e-4), jnp.abs(out2 - ref2).max()

    print("KERNEL_OK")
</pallas_src>

<mosaic_0001>
module attributes {stable_mosaic.version = 11 : i64} {
  func.func @_mlp_kernel(%arg0: i32, %arg1: memref<8x128xf32, #tpu.memory_space<vmem>>, %arg2: memref<24x8xf32, #tpu.memory_space<vmem>>, %arg3: memref<5x24x24xf32, #tpu.memory_space<vmem>>, %arg4: memref<8x24xf32, #tpu.memory_space<vmem>>, %arg5: memref<6x24x1xf32, #tpu.memory_space<vmem>>, %arg6: memref<8x1xf32, #tpu.memory_space<vmem>>, %arg7: memref<8x128xf32, #tpu.memory_space<vmem>>) attributes {dimension_semantics = [#tpu.dimension_semantics<parallel>], iteration_bounds = array<i64: 1>, scalar_prefetch = 0 : i64, scratch_operands = 0 : i64, tpu.core_type = #tpu.core_type<tc>, window_params = [{transform_indices = @transform_0, window_bounds = array<i64: 8, 128>}, {pipeline_mode = #tpu.pipeline_mode<synchronous>, transform_indices = @transform_1, window_bounds = array<i64: 24, 8>}, {pipeline_mode = #tpu.pipeline_mode<synchronous>, transform_indices = @transform_2, window_bounds = array<i64: 5, 24, 24>}, {pipeline_mode = #tpu.pipeline_mode<synchronous>, transform_indices = @transform_3, window_bounds = array<i64: 8, 24>}, {pipeline_mode = #tpu.pipeline_mode<synchronous>, transform_indices = @transform_4, window_bounds = array<i64: 6, 24, 1>}, {pipeline_mode = #tpu.pipeline_mode<synchronous>, transform_indices = @transform_5, window_bounds = array<i64: 8, 1>}, {transform_indices = @transform_6, window_bounds = array<i64: 8, 128>}]} {
    %c0 = arith.constant 0 : index
    %c0_0 = arith.constant 0 : index
    %0 = vector.load %arg2[%c0, %c0_0] : memref<24x8xf32, #tpu.memory_space<vmem>>, vector<24x8xf32>
    %c0_1 = arith.constant 0 : index
    %c0_2 = arith.constant 0 : index
    %1 = vector.load %arg1[%c0_1, %c0_2] : memref<8x128xf32, #tpu.memory_space<vmem>>, vector<8x128xf32>
    %cst = arith.constant dense<0.000000e+00> : vector<24x128xf32>
    %2 = tpu.matmul %0, %1, %cst {dimension_numbers = #tpu.dot_dimension_numbers<[1], [0], [0], [1], [0, 0, 1, 1], [], []>} : vector<24x8xf32>, vector<8x128xf32>, vector<24x128xf32> -> vector<24x128xf32>
    %c0_3 = arith.constant 0 : index
    %c0_4 = arith.constant 0 : index
    %c0_5 = arith.constant 0 : index
    %3 = vector.load %arg5[%c0_3, %c0_4, %c0_5] : memref<6x24x1xf32, #tpu.memory_space<vmem>>, vector<1x24x1xf32>
    %4 = vector.shape_cast %3 : vector<1x24x1xf32> to vector<24x1xf32>
    %5 = vector.broadcast %4 : vector<24x1xf32> to vector<24x128xf32>
    %6 = arith.addf %2, %5 : vector<24x128xf32>
    %cst_6 = arith.constant 5.000000e-01 : f32
    %7 = vector.broadcast %cst_6 : f32 to vector<24x128xf32>
    %8 = arith.mulf %7, %6 : vector<24x128xf32>
    %9 = math.tanh %8 : vector<24x128xf32>
    %cst_7 = arith.constant 5.000000e-01 : f32
    %10 = vector.broadcast %cst_7 : f32 to vector<24x128xf32>
    %11 = arith.mulf %10, %9 : vector<24x128xf32>
    %cst_8 = arith.constant 5.000000e-01 : f32
    %12 = vector.broadcast %cst_8 : f32 to vector<24x128xf32>
    %13 = arith.addf %11, %12 : vector<24x128xf32>
    %c0_9 = arith.constant 0 : index
    %c0_10 = arith.constant 0 : index
    %c0_11 = arith.constant 0 : index
    %14 = vector.load %arg3[%c0_9, %c0_10, %c0_11] : memref<5x24x24xf32, #tpu.memory_space<vmem>>, vector<1x24x24xf32>
    %15 = vector.shape_cast %14 : vector<1x24x24xf32> to vector<24x24xf32>
    %cst_12 = arith.constant dense<0.000000e+00> : vector<24x128xf32>
    %16 = tpu.matmul %15, %13, %cst_12 {dimension_numbers = #tpu.dot_dimension_numbers<[1], [0], [0], [1], [0, 0, 1, 1], [], []>} : vector<24x24xf32>, vector<24x128xf32>, vector<24x128xf32> -> vector<24x128xf32>
    %c1 = arith.constant 1 : index
    %c0_13 = arith.constant 0 : index
    %c0_14 = arith.constant 0 : index
    %17 = vector.load %arg5[%c1, %c0_13, %c0_14] : memref<6x24x1xf32, #tpu.memory_space<vmem>>, vector<1x24x1xf32>
    %18 = vector.shape_cast %17 : vector<1x24x1xf32> to vector<24x1xf32>
    %19 = vector.broadcast %18 : vector<24x1xf32> to vector<24x128xf32>
    %20 = arith.addf %16, %19 : vector<24x128xf32>
    %cst_15 = arith.constant 5.000000e-01 : f32
    %21 = vector.broadcast %cst_15 : f32 to vector<24x128xf32>
    %22 = arith.mulf %21, %20 : vector<24x128xf32>
    %23 = math.tanh %22 : vector<24x128xf32>
    %cst_16 = arith.constant 5.000000e-01 : f32
    %24 = vector.broadcast %cst_16 : f32 to vector<24x128xf32>
    %25 = arith.mulf %24, %23 : vector<24x128xf32>
    %cst_17 = arith.constant 5.000000e-01 : f32
    %26 = vector.broadcast %cst_17 : f32 to vector<24x128xf32>
    %27 = arith.addf %25, %26 : vector<24x128xf32>
    %c1_18 = arith.constant 1 : index
    %c0_19 = arith.constant 0 : index
    %c0_20 = arith.constant 0 : index
    %28 = vector.load %arg3[%c1_18, %c0_19, %c0_20] : memref<5x24x24xf32, #tpu.memory_space<vmem>>, vector<1x24x24xf32>
    %29 = vector.shape_cast %28 : vector<1x24x24xf32> to vector<24x24xf32>
    %cst_21 = arith.constant dense<0.000000e+00> : vector<24x128xf32>
    %30 = tpu.matmul %29, %27, %cst_21 {dimension_numbers = #tpu.dot_dimension_numbers<[1], [0], [0], [1], [0, 0, 1, 1], [], []>} : vector<24x24xf32>, vector<24x128xf32>, vector<24x128xf32> -> vector<24x128xf32>
    %c2 = arith.constant 2 : index
    %c0_22 = arith.constant 0 : index
    %c0_23 = arith.constant 0 : index
    %31 = vector.load %arg5[%c2, %c0_22, %c0_23] : memref<6x24x1xf32, #tpu.memory_space<vmem>>, vector<1x24x1xf32>
    %32 = vector.shape_cast %31 : vector<1x24x1xf32> to vector<24x1xf32>
    %33 = vector.broadcast %32 : vector<24x1xf32> to vector<24x128xf32>
    %34 = arith.addf %30, %33 : vector<24x128xf32>
    %cst_24 = arith.constant 5.000000e-01 : f32
    %35 = vector.broadcast %cst_24 : f32 to vector<24x128xf32>
    %36 = arith.mulf %35, %34 : vector<24x128xf32>
    %37 = math.tanh %36 : vector<24x128xf32>
    %cst_25 = arith.constant 5.000000e-01 : f32
    %38 = vector.broadcast %cst_25 : f32 to vector<24x128xf32>
    %39 = arith.mulf %38, %37 : vector<24x128xf32>
    %cst_26 = arith.constant 5.000000e-01 : f32
    %40 = vector.broadcast %cst_26 : f32 to vector<24x128xf32>
    %41 = arith.addf %39, %40 : vector<24x128xf32>
    %c2_27 = arith.constant 2 : index
    %c0_28 = arith.constant 0 : index
    %c0_29 = arith.constant 0 : index
    %42 = vector.load %arg3[%c2_27, %c0_28, %c0_29] : memref<5x24x24xf32, #tpu.memory_space<vmem>>, vector<1x24x24xf32>
    %43 = vector.shape_cast %42 : vector<1x24x24xf32> to vector<24x24xf32>
    %cst_30 = arith.constant dense<0.000000e+00> : vector<24x128xf32>
    %44 = tpu.matmul %43, %41, %cst_30 {dimension_numbers = #tpu.dot_dimension_numbers<[1], [0], [0], [1], [0, 0, 1, 1], [], []>} : vector<24x24xf32>, vector<24x128xf32>, vector<24x128xf32> -> vector<24x128xf32>
    %c3 = arith.constant 3 : index
    %c0_31 = arith.constant 0 : index
    %c0_32 = arith.constant 0 : index
    %45 = vector.load %arg5[%c3, %c0_31, %c0_32] : memref<6x24x1xf32, #tpu.memory_space<vmem>>, vector<1x24x1xf32>
    %46 = vector.shape_cast %45 : vector<1x24x1xf32> to vector<24x1xf32>
    %47 = vector.broadcast %46 : vector<24x1xf32> to vector<24x128xf32>
    %48 = arith.addf %44, %47 : vector<24x128xf32>
    %cst_33 = arith.constant 5.000000e-01 : f32
    %49 = vector.broadcast %cst_33 : f32 to vector<24x128xf32>
    %50 = arith.mulf %49, %48 : vector<24x128xf32>
    %51 = math.tanh %50 : vector<24x128xf32>
    %cst_34 = arith.constant 5.000000e-01 : f32
    %52 = vector.broadcast %cst_34 : f32 to vector<24x128xf32>
    %53 = arith.mulf %52, %51 : vector<24x128xf32>
    %cst_35 = arith.constant 5.000000e-01 : f32
    %54 = vector.broadcast %cst_35 : f32 to vector<24x128xf32>
    %55 = arith.addf %53, %54 : vector<24x128xf32>
    %c3_36 = arith.constant 3 : index
    %c0_37 = arith.constant 0 : index
    %c0_38 = arith.constant 0 : index
    %56 = vector.load %arg3[%c3_36, %c0_37, %c0_38] : memref<5x24x24xf32, #tpu.memory_space<vmem>>, vector<1x24x24xf32>
    %57 = vector.shape_cast %56 : vector<1x24x24xf32> to vector<24x24xf32>
    %cst_39 = arith.constant dense<0.000000e+00> : vector<24x128xf32>
    %58 = tpu.matmul %57, %55, %cst_39 {dimension_numbers = #tpu.dot_dimension_numbers<[1], [0], [0], [1], [0, 0, 1, 1], [], []>} : vector<24x24xf32>, vector<24x128xf32>, vector<24x128xf32> -> vector<24x128xf32>
    %c4 = arith.constant 4 : index
    %c0_40 = arith.constant 0 : index
    %c0_41 = arith.constant 0 : index
    %59 = vector.load %arg5[%c4, %c0_40, %c0_41] : memref<6x24x1xf32, #tpu.memory_space<vmem>>, vector<1x24x1xf32>
    %60 = vector.shape_cast %59 : vector<1x24x1xf32> to vector<24x1xf32>
    %61 = vector.broadcast %60 : vector<24x1xf32> to vector<24x128xf32>
    %62 = arith.addf %58, %61 : vector<24x128xf32>
    %cst_42 = arith.constant 5.000000e-01 : f32
    %63 = vector.broadcast %cst_42 : f32 to vector<24x128xf32>
    %64 = arith.mulf %63, %62 : vector<24x128xf32>
    %65 = math.tanh %64 : vector<24x128xf32>
    %cst_43 = arith.constant 5.000000e-01 : f32
    %66 = vector.broadcast %cst_43 : f32 to vector<24x128xf32>
    %67 = arith.mulf %66, %65 : vector<24x128xf32>
    %cst_44 = arith.constant 5.000000e-01 : f32
    %68 = vector.broadcast %cst_44 : f32 to vector<24x128xf32>
    %69 = arith.addf %67, %68 : vector<24x128xf32>
    %c4_45 = arith.constant 4 : index
    %c0_46 = arith.constant 0 : index
    %c0_47 = arith.constant 0 : index
    %70 = vector.load %arg3[%c4_45, %c0_46, %c0_47] : memref<5x24x24xf32, #tpu.memory_space<vmem>>, vector<1x24x24xf32>
    %71 = vector.shape_cast %70 : vector<1x24x24xf32> to vector<24x24xf32>
    %cst_48 = arith.constant dense<0.000000e+00> : vector<24x128xf32>
    %72 = tpu.matmul %71, %69, %cst_48 {dimension_numbers = #tpu.dot_dimension_numbers<[1], [0], [0], [1], [0, 0, 1, 1], [], []>} : vector<24x24xf32>, vector<24x128xf32>, vector<24x128xf32> -> vector<24x128xf32>
    %c5 = arith.constant 5 : index
    %c0_49 = arith.constant 0 : index
    %c0_50 = arith.constant 0 : index
    %73 = vector.load %arg5[%c5, %c0_49, %c0_50] : memref<6x24x1xf32, #tpu.memory_space<vmem>>, vector<1x24x1xf32>
    %74 = vector.shape_cast %73 : vector<1x24x1xf32> to vector<24x1xf32>
    %75 = vector.broadcast %74 : vector<24x1xf32> to vector<24x128xf32>
    %76 = arith.addf %72, %75 : vector<24x128xf32>
    %cst_51 = arith.constant 5.000000e-01 : f32
    %77 = vector.broadcast %cst_51 : f32 to vector<24x128xf32>
    %78 = arith.mulf %77, %76 : vector<24x128xf32>
    %79 = math.tanh %78 : vector<24x128xf32>
    %cst_52 = arith.constant 5.000000e-01 : f32
    %80 = vector.broadcast %cst_52 : f32 to vector<24x128xf32>
    %81 = arith.mulf %80, %79 : vector<24x128xf32>
    %cst_53 = arith.constant 5.000000e-01 : f32
    %82 = vector.broadcast %cst_53 : f32 to vector<24x128xf32>
    %83 = arith.addf %81, %82 : vector<24x128xf32>
    %c0_54 = arith.constant 0 : index
    %c0_55 = arith.constant 0 : index
    %84 = vector.load %arg4[%c0_54, %c0_55] : memref<8x24xf32, #tpu.memory_space<vmem>>, vector<8x24xf32>
    %cst_56 = arith.constant dense<0.000000e+00> : vector<8x128xf32>
    %85 = tpu.matmul %84, %83, %cst_56 {dimension_numbers = #tpu.dot_dimension_numbers<[1], [0], [0], [1], [0, 0, 1, 1], [], []>} : vector<8x24xf32>, vector<24x128xf32>, vector<8x128xf32> -> vector<8x128xf32>
    %c0_57 = arith.constant 0 : index
    %c0_58 = arith.constant 0 : index
    %86 = vector.load %arg6[%c0_57, %c0_58] : memref<8x1xf32, #tpu.memory_space<vmem>>, vector<8x1xf32>
    %87 = vector.broadcast %86 : vector<8x1xf32> to vector<8x128xf32>
    %88 = arith.addf %85, %87 : vector<8x128xf32>
    %c0_59 = arith.constant 0 : index
    %c0_60 = arith.constant 0 : index
    %89 = vector.load %arg7[%c0_59, %c0_60] : memref<8x128xf32, #tpu.memory_space<vmem>>, vector<8x128xf32>
    tpu.vector_store %arg7[%c0_59, %c0_60], %88 {strides = array<i32>} : memref<8x128xf32, #tpu.memory_space<vmem>>, vector<8x128xf32>,
    return
  }
  func.func @transform_0(%arg0: i32) -> (i32, i32) {
    %c0_i32 = arith.constant 0 : i32
    %c0_i32_0 = arith.constant 0 : i32
    return %c0_i32, %arg0 : i32, i32
  }
  func.func @transform_1(%arg0: i32) -> (i32, i32) {
    %c0_i32 = arith.constant 0 : i32
    %c0_i32_0 = arith.constant 0 : i32
    %c0_i32_1 = arith.constant 0 : i32
    return %c0_i32, %c0_i32_0 : i32, i32
  }
  func.func @transform_2(%arg0: i32) -> (i32, i32, i32) {
    %c0_i32 = arith.constant 0 : i32
    %c0_i32_0 = arith.constant 0 : i32
    %c0_i32_1 = arith.constant 0 : i32
    %c0_i32_2 = arith.constant 0 : i32
    return %c0_i32, %c0_i32_0, %c0_i32_1 : i32, i32, i32
  }
  func.func @transform_3(%arg0: i32) -> (i32, i32) {
    %c0_i32 = arith.constant 0 : i32
    %c0_i32_0 = arith.constant 0 : i32
    %c0_i32_1 = arith.constant 0 : i32
    return %c0_i32, %c0_i32_0 : i32, i32
  }
  func.func @transform_4(%arg0: i32) -> (i32, i32, i32) {
    %c0_i32 = arith.constant 0 : i32
    %c0_i32_0 = arith.constant 0 : i32
    %c0_i32_1 = arith.constant 0 : i32
    %c0_i32_2 = arith.constant 0 : i32
    return %c0_i32, %c0_i32_0, %c0_i32_1 : i32, i32, i32
  }
  func.func @transform_5(%arg0: i32) -> (i32, i32) {
    %c0_i32 = arith.constant 0 : i32
    %c0_i32_0 = arith.constant 0 : i32
    %c0_i32_1 = arith.constant 0 : i32
    return %c0_i32, %c0_i32_0 : i32, i32
  }
  func.func @transform_6(%arg0: i32) -> (i32, i32) {
    %c0_i32 = arith.constant 0 : i32
    %c0_i32_0 = arith.constant 0 : i32
    return %c0_i32, %arg0 : i32, i32
  }
}

</mosaic_0001>

<llo_original>
// kernel: deep_sig_net_forward.1
$region0: #{deep_sig_net_forward.1}
  #allocation0 [shape = 'u32[]', space=smem, size = 0x4, offset = 0x4, fixed_abs, tag = 'smem constant byte address 0x4 - core index']
  #allocation1 [shape = 'u32[144,128]{1,0:T(1,128)}', space=vmem, size = 0x12000, scoped, tag = 'internal scratch']
  %s0 = inlined_call_operand.vmem [shape: f32[8,128], index: 0, kind: input, shape index: {}]
  %s1 = inlined_call_operand.vmem [shape: f32[24,8], index: 1, kind: input, shape index: {}]
  %s2 = inlined_call_operand.vmem [shape: f32[5,24,24], index: 2, kind: input, shape index: {}]
  %s3 = inlined_call_operand.vmem [shape: f32[8,24], index: 3, kind: input, shape index: {}]
  %s4 = inlined_call_operand.vmem [shape: f32[6,24,1], index: 4, kind: input, shape index: {}]
  %s5 = inlined_call_operand.vmem [shape: f32[8,1], index: 5, kind: input, shape index: {}]
  %s6 = inlined_call_operand.vmem [shape: f32[8,128], index: 6, kind: output, shape index: {}]
  %s7 = sld [smem:[#allocation0]]
  $region34: #{deep_sig_net_forward.1} parent=0
    _
  %s9 = ssub.s32 1, %s7
  %s10 = scalar_select 0, %s9, %s7
  // Predicated region
  $region2: #{deep_sig_net_forward.1} parent=0 // pred_check
    _
  $region3: #{deep_sig_net_forward.1} parent=0 // pred_check_branch
    %12 = sbr.rel (0) target = $region5
  $region4: #{deep_sig_net_forward.1} parent=0 // pred_region
    _
  $region5: #{deep_sig_net_forward.1} parent=0 // pred_fallthru
    _
  // Predicated region
  $region6: #{deep_sig_net_forward.1} parent=0 // pred_check
    _
  $region7: #{deep_sig_net_forward.1} parent=0 // pred_check_branch
    %14 = sbr.rel (0) target = $region9
  $region8: #{deep_sig_net_forward.1} parent=0 // pred_region
    _
  $region9: #{deep_sig_net_forward.1} parent=0 // pred_fallthru
    _
  // Predicated region
  $region10: #{deep_sig_net_forward.1} parent=0 // pred_check
    _
  $region11: #{deep_sig_net_forward.1} parent=0 // pred_check_branch
    %16 = sbr.rel (0) target = $region13
  $region12: #{deep_sig_net_forward.1} parent=0 // pred_region
    _
  $region13: #{deep_sig_net_forward.1} parent=0 // pred_fallthru
    _
  // Predicated region
  $region14: #{deep_sig_net_forward.1} parent=0 // pred_check
    _
  $region15: #{deep_sig_net_forward.1} parent=0 // pred_check_branch
    %18 = sbr.rel (0) target = $region17
  $region16: #{deep_sig_net_forward.1} parent=0 // pred_region
    _
  $region17: #{deep_sig_net_forward.1} parent=0 // pred_fallthru
    _
  // Predicated region
  $region18: #{deep_sig_net_forward.1} parent=0 // pred_check
    _
  $region19: #{deep_sig_net_forward.1} parent=0 // pred_check_branch
    %20 = sbr.rel (0) target = $region21
  $region20: #{deep_sig_net_forward.1} parent=0 // pred_region
    _
  $region21: #{deep_sig_net_forward.1} parent=0 // pred_fallthru
    _
  // Predicated region
  $region22: #{deep_sig_net_forward.1} parent=0 // pred_check
    _
  $region23: #{deep_sig_net_forward.1} parent=0 // pred_check_branch
    %22 = sbr.rel (0) target = $region25
  $region24: #{deep_sig_net_forward.1} parent=0 // pred_region
    _
  $region25: #{deep_sig_net_forward.1} parent=0 // pred_fallthru
    _
  %v23 = vld [vmem:[%s1] sm:$0xff]
  %v24 = vld [vmem:[%s1 + $0x8] sm:$0xff]
  %v25 = vld [vmem:[%s1 + $0x10] sm:$0xff]
  %v26 = vld [vmem:[%s0] sm:$0xff]
  %v27 = vld [vmem:[%s4] sm:$0xff]
  %v28 = vld [vmem:[%s4 + $0x8] sm:$0xff]
  %v29 = vld [vmem:[%s4 + $0x10] sm:$0xff]
  %31 = vset.pattern.permute.xlu0 0
  %32 = vperm.xlu0 %31, %v27
  %v33 = vpop.permute.xlu0 %32
  %36 = vset.pattern.permute.xlu0 0
  %37 = vperm.xlu0 %36, %v28
  %v38 = vpop.permute.xlu0 %37
  %41 = vset.pattern.permute.xlu0 0
  %42 = vperm.xlu0 %41, %v29
  %v43 = vpop.permute.xlu0 %42
  %vm45 = vcmask 64512
  %v47 = vsel %vm45, %v23, 0
  %v50 = vsel %vm45, %v24, 0
  %v53 = vsel %vm45, %v25, 0
  %55 = vmatprep.subr.mxu0 0.0
  %56 = vmatpush1.msra.mxu0 %v26
  %57 = vmatprep.subr.mxu0 0.0
  %58 = vmatpush1.msra.mxu0 0.0
  %59 = vmatprep.subr.mxu0 0.0
  %60 = vmatpush1.msra.mxu0 0.0
  %61 = vmatprep.subr.mxu0 0.0
  %62 = vmatpush1.msra.mxu0 0.0
  %63 = vmatprep.subr.mxu0 0.0
  %64 = vmatpush1.msra.mxu0 0.0
  %65 = vmatprep.subr.mxu0 0.0
  %66 = vmatpush1.msra.mxu0 0.0
  %67 = vmatprep.subr.mxu0 0.0
  %68 = vmatpush1.msra.mxu0 0.0
  %69 = vmatprep.subr.mxu0 0.0
  %70 = vmatpush1.msra.mxu0 0.0
  %71 = vmatprep.subr.mxu0 0.0
  %72 = vmatpush1.msra.mxu0 0.0
  %73 = vmatprep.subr.mxu0 0.0
  %74 = vmatpush1.msra.mxu0 0.0
  %75 = vmatprep.subr.mxu0 0.0
  %76 = vmatpush1.msra.mxu0 0.0
  %77 = vmatprep.subr.mxu0 0.0
  %78 = vmatpush1.msra.mxu0 0.0
  %79 = vmatprep.subr.mxu0 0.0
  %80 = vmatpush1.msra.mxu0 0.0
  %81 = vmatprep.subr.mxu0 0.0
  %82 = vmatpush1.msra.mxu0 0.0
  %83 = vmatprep.subr.mxu0 0.0
  %84 = vmatpush1.msra.mxu0 0.0
  %85 = vmatprep.subr.mxu0 0.0
  %86 = vmatpush1.msra.mxu0 0.0
  %87 = vmatprep.subr.mxu0 0.0
  %88 = vmatpush1.msra.mxu0 0.0
  %89 = vmatprep.subr.mxu0 0.0
  %90 = vmatpush1.msra.mxu0 0.0
  %91 = vmatprep.subr.mxu0 0.0
  %92 = vmatpush1.msra.mxu0 0.0
  %93 = vmatprep.subr.mxu0 0.0
  %94 = vmatpush1.msra.mxu0 0.0
  %95 = vmatprep.subr.mxu0 0.0
  %96 = vmatpush1.msra.mxu0 0.0
  %97 = vmatprep.subr.mxu0 0.0
  %98 = vmatpush1.msra.mxu0 0.0
  %99 = vmatprep.subr.mxu0 0.0
  %100 = vmatpush1.msra.mxu0 0.0
  %101 = vmatprep.subr.mxu0 0.0
  %102 = vmatpush1.msra.mxu0 0.0
  %103 = vmatprep.subr.mxu0 0.0
  %104 = vmatpush1.msra.mxu0 0.0
  %105 = vmatprep.subr.mxu0 0.0
  %106 = vmatpush1.msra.mxu0 0.0
  %107 = vmatprep.subr.mxu0 0.0
  %108 = vmatpush1.msra.mxu0 0.0
  %109 = vmatprep.subr.mxu0 0.0
  %110 = vmatpush1.msra.mxu0 0.0
  %111 = vmatprep.subr.mxu0 0.0
  %112 = vmatpush1.msra.mxu0 0.0
  %113 = vmatprep.subr.mxu0 0.0
  %114 = vmatpush1.msra.mxu0 0.0
  %115 = vmatprep.subr.mxu0 0.0
  %116 = vmatpush1.msra.mxu0 0.0
  %117 = vmatprep.subr.mxu0 0.0
  %118 = vmatpush1.msra.mxu0 0.0
  %119 = vmatprep.mubr.f32.mxu0 0.0
  %120 = vmatmul.mubr.f32.gmra.mrb[0].mxu0 %v47
  %v121 = vpop.f32.mrb[0].mxu0
  %v122 = vadd.f32 %v33, %v121
  %v123 = vpop.f32.mrb[0].mxu0
  %124 = vmatprep.mubr.f32.mxu0 0.0
  %125 = vmatmul.mubr.f32.gmra.mrb[0].mxu0 %v50
  %v126 = vpop.f32.mrb[0].mxu0
  %v127 = vadd.f32 %v38, %v126
  %v128 = vpop.f32.mrb[0].mxu0
  %129 = vmatprep.mubr.f32.mxu0 0.0
  %130 = vmatmul.mubr.f32.gmra.mrb[0].mxu0 %v53
  %v131 = vpop.f32.mrb[0].mxu0
  %v132 = vadd.f32 %v43, %v131
  %v133 = vpop.f32.mrb[0].mxu0
  %134 = vdwg.mxu0
  %v135 = vmul.f32 %v122, 0.5
  %v136 = vmul.f32 %v127, 0.5
  %v137 = vmul.f32 %v132, 0.5
  %v138 = vtanh.pop %v135
  %v139 = vtanh.pop %v136
  %v140 = vtanh.pop %v137
  %v141 = vmul.f32 %v138, 0.5
  %v142 = vmul.f32 %v139, 0.5
  %v143 = vmul.f32 %v140, 0.5
  %v144 = vadd.f32 %v141, 0.5
  %v145 = vadd.f32 %v142, 0.5
  %v146 = vadd.f32 %v143, 0.5
  %v147 = vld [vmem:[%s2] sm:$0xff]
  %v148 = vld [vmem:[%s2 + $0x8] sm:$0xff]
  %v149 = vld [vmem:[%s2 + $0x10] sm:$0xff]
  %s150 = scalar_lea.vmem %s4, 24
  %v151 = vld [vmem:[%s150] sm:$0xff]
  %v152 = vld [vmem:[%s150 + $0x8] sm:$0xff]
  %v153 = vld [vmem:[%s150 + $0x10] sm:$0xff]
  %155 = vset.pattern.permute.xlu0 0
  %156 = vperm.xlu0 %155, %v151
  %v157 = vpop.permute.xlu0 %156
  %160 = vset.pattern.permute.xlu0 0
  %161 = vperm.xlu0 %160, %v152
  %v162 = vpop.permute.xlu0 %161
  %165 = vset.pattern.permute.xlu0 0
  %166 = vperm.xlu0 %165, %v153
  %v167 = vpop.permute.xlu0 %166
  %vm169 = vcmask 195584
  %v171 = vsel %vm169, %v147, 0
  %v174 = vsel %vm169, %v148, 0
  %v177 = vsel %vm169, %v149, 0
  %179 = vmatprep.subr.mxu0 0.0
  %180 = vmatpush1.msra.mxu0 %v144
  %181 = vmatprep.subr.mxu0 0.0
  %182 = vmatpush1.msra.mxu0 %v145
  %183 = vmatprep.subr.mxu0 0.0
  %184 = vmatpush1.msra.mxu0 %v146
  %185 = vmatprep.subr.mxu0 0.0
  %186 = vmatpush1.msra.mxu0 0.0
  %187 = vmatprep.subr.mxu0 0.0
  %188 = vmatpush1.msra.mxu0 0.0
  %189 = vmatprep.subr.mxu0 0.0
  %190 = vmatpush1.msra.mxu0 0.0
  %191 = vmatprep.subr.mxu0 0.0
  %192 = vmatpush1.msra.mxu0 0.0
  %193 = vmatprep.subr.mxu0 0.0
  %194 = vmatpush1.msra.mxu0 0.0
  %195 = vmatprep.subr.mxu0 0.0
  %196 = vmatpush1.msra.mxu0 0.0
  %197 = vmatprep.subr.mxu0 0.0
  %198 = vmatpush1.msra.mxu0 0.0
  %199 = vmatprep.subr.mxu0 0.0
  %200 = vmatpush1.msra.mxu0 0.0
  %201 = vmatprep.subr.mxu0 0.0
  %202 = vmatpush1.msra.mxu0 0.0
  %203 = vmatprep.subr.mxu0 0.0
  %204 = vmatpush1.msra.mxu0 0.0
  %205 = vmatprep.subr.mxu0 0.0
  %206 = vmatpush1.msra.mxu0 0.0
  %207 = vmatprep.subr.mxu0 0.0
  %208 = vmatpush1.msra.mxu0 0.0
  %209 = vmatprep.subr.mxu0 0.0
  %210 = vmatpush1.msra.mxu0 0.0
  %211 = vmatprep.subr.mxu0 0.0
  %212 = vmatpush1.msra.mxu0 0.0
  %213 = vmatprep.subr.mxu0 0.0
  %214 = vmatpush1.msra.mxu0 0.0
  %215 = vmatprep.subr.mxu0 0.0
  %216 = vmatpush1.msra.mxu0 0.0
  %217 = vmatprep.subr.mxu0 0.0
  %218 = vmatpush1.msra.mxu0 0.0
  %219 = vmatprep.subr.mxu0 0.0
  %220 = vmatpush1.msra.mxu0 0.0
  %221 = vmatprep.subr.mxu0 0.0
  %222 = vmatpush1.msra.mxu0 0.0
  %223 = vmatprep.subr.mxu0 0.0
  %224 = vmatpush1.msra.mxu0 0.0
  %225 = vmatprep.subr.mxu0 0.0
  %226 = vmatpush1.msra.mxu0 0.0
  %227 = vmatprep.subr.mxu0 0.0
  %228 = vmatpush1.msra.mxu0 0.0
  %229 = vmatprep.subr.mxu0 0.0
  %230 = vmatpush1.msra.mxu0 0.0
  %231 = vmatprep.subr.mxu0 0.0
  %232 = vmatpush1.msra.mxu0 0.0
  %233 = vmatprep.subr.mxu0 0.0
  %234 = vmatpush1.msra.mxu0 0.0
  %235 = vmatprep.subr.mxu0 0.0
  %236 = vmatpush1.msra.mxu0 0.0
  %237 = vmatprep.subr.mxu0 0.0
  %238 = vmatpush1.msra.mxu0 0.0
  %239 = vmatprep.subr.mxu0 0.0
  %240 = vmatpush1.msra.mxu0 0.0
  %241 = vmatprep.subr.mxu0 0.0
  %242 = vmatpush1.msra.mxu0 0.0
  %243 = vmatprep.mubr.f32.mxu0 0.0
  %244 = vmatmul.mubr.f32.gmra.mrb[0].mxu0 %v171
  %v245 = vpop.f32.mrb[0].mxu0
  %v246 = vadd.f32 %v157, %v245
  %v247 = vpop.f32.mrb[0].mxu0
  %248 = vmatprep.mubr.f32.mxu0 0.0
  %249 = vmatmul.mubr.f32.gmra.mrb[0].mxu0 %v174
  %v250 = vpop.f32.mrb[0].mxu0
  %v251 = vadd.f32 %v162, %v250
  %v252 = vpop.f32.mrb[0].mxu0
  %253 = vmatprep.mubr.f32.mxu0 0.0
  %254 = vmatmul.mubr.f32.gmra.mrb[0].mxu0 %v177
  %v255 = vpop.f32.mrb[0].mxu0
  %v256 = vadd.f32 %v167, %v255
  %v257 = vpop.f32.mrb[0].mxu0
  %258 = vdwg.mxu0
  %v259 = vmul.f32 %v246, 0.5
  %v260 = vmul.f32 %v251, 0.5
  %v261 = vmul.f32 %v256, 0.5
  %v262 = vtanh.pop %v259
  %v263 = vtanh.pop %v260
  %v264 = vtanh.pop %v261
  %v265 = vmul.f32 %v262, 0.5
  %v266 = vmul.f32 %v263, 0.5
  %v267 = vmul.f32 %v264, 0.5
  %v268 = vadd.f32 %v265, 0.5
  %v269 = vadd.f32 %v266, 0.5
  %v270 = vadd.f32 %v267, 0.5
  %s271 = scalar_lea.vmem %s2, 24
  %v272 = vld [vmem:[%s271] sm:$0xff]
  %v273 = vld [vmem:[%s271 + $0x8] sm:$0xff]
  %v274 = vld [vmem:[%s271 + $0x10] sm:$0xff]
  %s275 = scalar_lea.vmem %s4, 48
  %v276 = vld [vmem:[%s275] sm:$0xff]
  %v277 = vld [vmem:[%s275 + $0x8] sm:$0xff]
  %v278 = vld [vmem:[%s275 + $0x10] sm:$0xff]
  %280 = vset.pattern.permute.xlu0 0
  %281 = vperm.xlu0 %280, %v276
  %v282 = vpop.permute.xlu0 %281
  %285 = vset.pattern.permute.xlu0 0
  %286 = vperm.xlu0 %285, %v277
  %v287 = vpop.permute.xlu0 %286
  %290 = vset.pattern.permute.xlu0 0
  %291 = vperm.xlu0 %290, %v278
  %v292 = vpop.permute.xlu0 %291
  %v295 = vsel %vm169, %v272, 0
  %v298 = vsel %vm169, %v273, 0
  %v301 = vsel %vm169, %v274, 0
  %303 = vmatprep.subr.mxu0 0.0
  %304 = vmatpush1.msra.mxu0 %v268
  %305 = vmatprep.subr.mxu0 0.0
  %306 = vmatpush1.msra.mxu0 %v269
  %307 = vmatprep.subr.mxu0 0.0
  %308 = vmatpush1.msra.mxu0 %v270
  %309 = vmatprep.subr.mxu0 0.0
  %310 = vmatpush1.msra.mxu0 0.0
  %311 = vmatprep.subr.mxu0 0.0
  %312 = vmatpush1.msra.mxu0 0.0
  %313 = vmatprep.subr.mxu0 0.0
  %314 = vmatpush1.msra.mxu0 0.0
  %315 = vmatprep.subr.mxu0 0.0
  %316 = vmatpush1.msra.mxu0 0.0
  %317 = vmatprep.subr.mxu0 0.0
  %318 = vmatpush1.msra.mxu0 0.0
  %319 = vmatprep.subr.mxu0 0.0
  %320 = vmatpush1.msra.mxu0 0.0
  %321 = vmatprep.subr.mxu0 0.0
  %322 = vmatpush1.msra.mxu0 0.0
  %323 = vmatprep.subr.mxu0 0.0
  %324 = vmatpush1.msra.mxu0 0.0
  %325 = vmatprep.subr.mxu0 0.0
  %326 = vmatpush1.msra.mxu0 0.0
  %327 = vmatprep.subr.mxu0 0.0
  %328 = vmatpush1.msra.mxu0 0.0
  %329 = vmatprep.subr.mxu0 0.0
  %330 = vmatpush1.msra.mxu0 0.0
  %331 = vmatprep.subr.mxu0 0.0
  %332 = vmatpush1.msra.mxu0 0.0
  %333 = vmatprep.subr.mxu0 0.0
  %334 = vmatpush1.msra.mxu0 0.0
  %335 = vmatprep.subr.mxu0 0.0
  %336 = vmatpush1.msra.mxu0 0.0
  %337 = vmatprep.subr.mxu0 0.0
  %338 = vmatpush1.msra.mxu0 0.0
  %339 = vmatprep.subr.mxu0 0.0
  %340 = vmatpush1.msra.mxu0 0.0
  %341 = vmatprep.subr.mxu0 0.0
  %342 = vmatpush1.msra.mxu0 0.0
  %343 = vmatprep.subr.mxu0 0.0
  %344 = vmatpush1.msra.mxu0 0.0
  %345 = vmatprep.subr.mxu0 0.0
  %346 = vmatpush1.msra.mxu0 0.0
  %347 = vmatprep.subr.mxu0 0.0
  %348 = vmatpush1.msra.mxu0 0.0
  %349 = vmatprep.subr.mxu0 0.0
  %350 = vmatpush1.msra.mxu0 0.0
  %351 = vmatprep.subr.mxu0 0.0
  %352 = vmatpush1.msra.mxu0 0.0
  %353 = vmatprep.subr.mxu0 0.0
  %354 = vmatpush1.msra.mxu0 0.0
  %355 = vmatprep.subr.mxu0 0.0
  %356 = vmatpush1.msra.mxu0 0.0
  %357 = vmatprep.subr.mxu0 0.0
  %358 = vmatpush1.msra.mxu0 0.0
  %359 = vmatprep.subr.mxu0 0.0
  %360 = vmatpush1.msra.mxu0 0.0
  %361 = vmatprep.subr.mxu0 0.0
  %362 = vmatpush1.msra.mxu0 0.0
  %363 = vmatprep.subr.mxu0 0.0
  %364 = vmatpush1.msra.mxu0 0.0
  %365 = vmatprep.subr.mxu0 0.0
  %366 = vmatpush1.msra.mxu0 0.0
  %367 = vmatprep.mubr.f32.mxu0 0.0
  %368 = vmatmul.mubr.f32.gmra.mrb[0].mxu0 %v295
  %v369 = vpop.f32.mrb[0].mxu0
  %v370 = vadd.f32 %v282, %v369
  %v371 = vpop.f32.mrb[0].mxu0
  %372 = vmatprep.mubr.f32.mxu0 0.0
  %373 = vmatmul.mubr.f32.gmra.mrb[0].mxu0 %v298
  %v374 = vpop.f32.mrb[0].mxu0
  %v375 = vadd.f32 %v287, %v374
  %v376 = vpop.f32.mrb[0].mxu0
  %377 = vmatprep.mubr.f32.mxu0 0.0
  %378 = vmatmul.mubr.f32.gmra.mrb[0].mxu0 %v301
  %v379 = vpop.f32.mrb[0].mxu0
  %v380 = vadd.f32 %v292, %v379
  %v381 = vpop.f32.mrb[0].mxu0
  %382 = vdwg.mxu0
  %v383 = vmul.f32 %v370, 0.5
  %v384 = vmul.f32 %v375, 0.5
  %v385 = vmul.f32 %v380, 0.5
  %v386 = vtanh.pop %v383
  %v387 = vtanh.pop %v384
  %v388 = vtanh.pop %v385
  %v389 = vmul.f32 %v386, 0.5
  %v390 = vmul.f32 %v387, 0.5
  %v391 = vmul.f32 %v388, 0.5
  %v392 = vadd.f32 %v389, 0.5
  %v393 = vadd.f32 %v390, 0.5
  %v394 = vadd.f32 %v391, 0.5
  %s395 = scalar_lea.vmem %s2, 48
  %v396 = vld [vmem:[%s395] sm:$0xff]
  %v397 = vld [vmem:[%s395 + $0x8] sm:$0xff]
  %v398 = vld [vmem:[%s395 + $0x10] sm:$0xff]
  %s399 = scalar_lea.vmem %s4, 72
  %v400 = vld [vmem:[%s399] sm:$0xff]
  %v401 = vld [vmem:[%s399 + $0x8] sm:$0xff]
  %v402 = vld [vmem:[%s399 + $0x10] sm:$0xff]
  %404 = vset.pattern.permute.xlu0 0
  %405 = vperm.xlu0 %404, %v400
  %v406 = vpop.permute.xlu0 %405
  %409 = vset.pattern.permute.xlu0 0
  %410 = vperm.xlu0 %409, %v401
  %v411 = vpop.permute.xlu0 %410
  %414 = vset.pattern.permute.xlu0 0
  %415 = vperm.xlu0 %414, %v402
  %v416 = vpop.permute.xlu0 %415
  %v419 = vsel %vm169, %v396, 0
  %v422 = vsel %vm169, %v397, 0
  %v425 = vsel %vm169, %v398, 0
  %427 = vmatprep.subr.mxu0 0.0
  %428 = vmatpush1.msra.mxu0 %v392
  %429 = vmatprep.subr.mxu0 0.0
  %430 = vmatpush1.msra.mxu0 %v393
  %431 = vmatprep.subr.mxu0 0.0
  %432 = vmatpush1.msra.mxu0 %v394
  %433 = vmatprep.subr.mxu0 0.0
  %434 = vmatpush1.msra.mxu0 0.0
  %435 = vmatprep.subr.mxu0 0.0
  %436 = vmatpush1.msra.mxu0 0.0
  %437 = vmatprep.subr.mxu0 0.0
  %438 = vmatpush1.msra.mxu0 0.0
  %439 = vmatprep.subr.mxu0 0.0
  %440 = vmatpush1.msra.mxu0 0.0
  %441 = vmatprep.subr.mxu0 0.0
  %442 = vmatpush1.msra.mxu0 0.0
  %443 = vmatprep.subr.mxu0 0.0
  %444 = vmatpush1.msra.mxu0 0.0
  %445 = vmatprep.subr.mxu0 0.0
  %446 = vmatpush1.msra.mxu0 0.0
  %447 = vmatprep.subr.mxu0 0.0
  %448 = vmatpush1.msra.mxu0 0.0
  %449 = vmatprep.subr.mxu0 0.0
  %450 = vmatpush1.msra.mxu0 0.0
  %451 = vmatprep.subr.mxu0 0.0
  %452 = vmatpush1.msra.mxu0 0.0
  %453 = vmatprep.subr.mxu0 0.0
  %454 = vmatpush1.msra.mxu0 0.0
  %455 = vmatprep.subr.mxu0 0.0
  %456 = vmatpush1.msra.mxu0 0.0
  %457 = vmatprep.subr.mxu0 0.0
  %458 = vmatpush1.msra.mxu0 0.0
  %459 = vmatprep.subr.mxu0 0.0
  %460 = vmatpush1.msra.mxu0 0.0
  %461 = vmatprep.subr.mxu0 0.0
  %462 = vmatpush1.msra.mxu0 0.0
  %463 = vmatprep.subr.mxu0 0.0
  %464 = vmatpush1.msra.mxu0 0.0
  %465 = vmatprep.subr.mxu0 0.0
  %466 = vmatpush1.msra.mxu0 0.0
  %467 = vmatprep.subr.mxu0 0.0
  %468 = vmatpush1.msra.mxu0 0.0
  %469 = vmatprep.subr.mxu0 0.0
  %470 = vmatpush1.msra.mxu0 0.0
  %471 = vmatprep.subr.mxu0 0.0
  %472 = vmatpush1.msra.mxu0 0.0
  %473 = vmatprep.subr.mxu0 0.0
  %474 = vmatpush1.msra.mxu0 0.0
  %475 = vmatprep.subr.mxu0 0.0
  %476 = vmatpush1.msra.mxu0 0.0
  %477 = vmatprep.subr.mxu0 0.0
  %478 = vmatpush1.msra.mxu0 0.0
  %479 = vmatprep.subr.mxu0 0.0
  %480 = vmatpush1.msra.mxu0 0.0
  %481 = vmatprep.subr.mxu0 0.0
  %482 = vmatpush1.msra.mxu0 0.0
  %483 = vmatprep.subr.mxu0 0.0
  %484 = vmatpush1.msra.mxu0 0.0
  %485 = vmatprep.subr.mxu0 0.0
  %486 = vmatpush1.msra.mxu0 0.0
  %487 = vmatprep.subr.mxu0 0.0
  %488 = vmatpush1.msra.mxu0 0.0
  %489 = vmatprep.subr.mxu0 0.0
  %490 = vmatpush1.msra.mxu0 0.0
  %491 = vmatprep.mubr.f32.mxu0 0.0
  %492 = vmatmul.mubr.f32.gmra.mrb[0].mxu0 %v419
  %v493 = vpop.f32.mrb[0].mxu0
  %v494 = vadd.f32 %v406, %v493
  %v495 = vpop.f32.mrb[0].mxu0
  %496 = vmatprep.mubr.f32.mxu0 0.0
  %497 = vmatmul.mubr.f32.gmra.mrb[0].mxu0 %v422
  %v498 = vpop.f32.mrb[0].mxu0
  %v499 = vadd.f32 %v411, %v498
  %v500 = vpop.f32.mrb[0].mxu0
  %501 = vmatprep.mubr.f32.mxu0 0.0
  %502 = vmatmul.mubr.f32.gmra.mrb[0].mxu0 %v425
  %v503 = vpop.f32.mrb[0].mxu0
  %v504 = vadd.f32 %v416, %v503
  %v505 = vpop.f32.mrb[0].mxu0
  %506 = vdwg.mxu0
  %v507 = vmul.f32 %v494, 0.5
  %v508 = vmul.f32 %v499, 0.5
  %v509 = vmul.f32 %v504, 0.5
  %v510 = vtanh.pop %v507
  %v511 = vtanh.pop %v508
  %v512 = vtanh.pop %v509
  %v513 = vmul.f32 %v510, 0.5
  %v514 = vmul.f32 %v511, 0.5
  %v515 = vmul.f32 %v512, 0.5
  %v516 = vadd.f32 %v513, 0.5
  %v517 = vadd.f32 %v514, 0.5
  %v518 = vadd.f32 %v515, 0.5
  %s519 = scalar_lea.vmem %s2, 72
  %v520 = vld [vmem:[%s519] sm:$0xff]
  %v521 = vld [vmem:[%s519 + $0x8] sm:$0xff]
  %v522 = vld [vmem:[%s519 + $0x10] sm:$0xff]
  %s523 = scalar_lea.vmem %s4, 96
  %v524 = vld [vmem:[%s523] sm:$0xff]
  %v525 = vld [vmem:[%s523 + $0x8] sm:$0xff]
  %v526 = vld [vmem:[%s523 + $0x10] sm:$0xff]
  %528 = vset.pattern.permute.xlu0 0
  %529 = vperm.xlu0 %528, %v524
  %v530 = vpop.permute.xlu0 %529
  %533 = vset.pattern.permute.xlu0 0
  %534 = vperm.xlu0 %533, %v525
  %v535 = vpop.permute.xlu0 %534
  %538 = vset.pattern.permute.xlu0 0
  %539 = vperm.xlu0 %538, %v526
  %v540 = vpop.permute.xlu0 %539
  %v543 = vsel %vm169, %v520, 0
  %v546 = vsel %vm169, %v521, 0
  %v549 = vsel %vm169, %v522, 0
  %551 = vmatprep.subr.mxu0 0.0
  %552 = vmatpush1.msra.mxu0 %v516
  %553 = vmatprep.subr.mxu0 0.0
  %554 = vmatpush1.msra.mxu0 %v517
  %555 = vmatprep.subr.mxu0 0.0
  %556 = vmatpush1.msra.mxu0 %v518
  %557 = vmatprep.subr.mxu0 0.0
  %558 = vmatpush1.msra.mxu0 0.0
  %559 = vmatprep.subr.mxu0 0.0
  %560 = vmatpush1.msra.mxu0 0.0
  %561 = vmatprep.subr.mxu0 0.0
  %562 = vmatpush1.msra.mxu0 0.0
  %563 = vmatprep.subr.mxu0 0.0
  %564 = vmatpush1.msra.mxu0 0.0
  %565 = vmatprep.subr.mxu0 0.0
  %566 = vmatpush1.msra.mxu0 0.0
  %567 = vmatprep.subr.mxu0 0.0
  %568 = vmatpush1.msra.mxu0 0.0
  %569 = vmatprep.subr.mxu0 0.0
  %570 = vmatpush1.msra.mxu0 0.0
  %571 = vmatprep.subr.mxu0 0.0
  %572 = vmatpush1.msra.mxu0 0.0
  %573 = vmatprep.subr.mxu0 0.0
  %574 = vmatpush1.msra.mxu0 0.0
  %575 = vmatprep.subr.mxu0 0.0
  %576 = vmatpush1.msra.mxu0 0.0
  %577 = vmatprep.subr.mxu0 0.0
  %578 = vmatpush1.msra.mxu0 0.0
  %579 = vmatprep.subr.mxu0 0.0
  %580 = vmatpush1.msra.mxu0 0.0
  %581 = vmatprep.subr.mxu0 0.0
  %582 = vmatpush1.msra.mxu0 0.0
  %583 = vmatprep.subr.mxu0 0.0
  %584 = vmatpush1.msra.mxu0 0.0
  %585 = vmatprep.subr.mxu0 0.0
  %586 = vmatpush1.msra.mxu0 0.0
  %587 = vmatprep.subr.mxu0 0.0
  %588 = vmatpush1.msra.mxu0 0.0
  %589 = vmatprep.subr.mxu0 0.0
  %590 = vmatpush1.msra.mxu0 0.0
  %591 = vmatprep.subr.mxu0 0.0
  %592 = vmatpush1.msra.mxu0 0.0
  %593 = vmatprep.subr.mxu0 0.0
  %594 = vmatpush1.msra.mxu0 0.0
  %595 = vmatprep.subr.mxu0 0.0
  %596 = vmatpush1.msra.mxu0 0.0
  %597 = vmatprep.subr.mxu0 0.0
  %598 = vmatpush1.msra.mxu0 0.0
  %599 = vmatprep.subr.mxu0 0.0
  %600 = vmatpush1.msra.mxu0 0.0
  %601 = vmatprep.subr.mxu0 0.0
  %602 = vmatpush1.msra.mxu0 0.0
  %603 = vmatprep.subr.mxu0 0.0
  %604 = vmatpush1.msra.mxu0 0.0
  %605 = vmatprep.subr.mxu0 0.0
  %606 = vmatpush1.msra.mxu0 0.0
  %607 = vmatprep.subr.mxu0 0.0
  %608 = vmatpush1.msra.mxu0 0.0
  %609 = vmatprep.subr.mxu0 0.0
  %610 = vmatpush1.msra.mxu0 0.0
  %611 = vmatprep.subr.mxu0 0.0
  %612 = vmatpush1.msra.mxu0 0.0
  %613 = vmatprep.subr.mxu0 0.0
  %614 = vmatpush1.msra.mxu0 0.0
  %615 = vmatprep.mubr.f32.mxu0 0.0
  %616 = vmatmul.mubr.f32.gmra.mrb[0].mxu0 %v543
  %v617 = vpop.f32.mrb[0].mxu0
  %v618 = vadd.f32 %v530, %v617
  %v619 = vpop.f32.mrb[0].mxu0
  %620 = vmatprep.mubr.f32.mxu0 0.0
  %621 = vmatmul.mubr.f32.gmra.mrb[0].mxu0 %v546
  %v622 = vpop.f32.mrb[0].mxu0
  %v623 = vadd.f32 %v535, %v622
  %v624 = vpop.f32.mrb[0].mxu0
  %625 = vmatprep.mubr.f32.mxu0 0.0
  %626 = vmatmul.mubr.f32.gmra.mrb[0].mxu0 %v549
  %v627 = vpop.f32.mrb[0].mxu0
  %v628 = vadd.f32 %v540, %v627
  %v629 = vpop.f32.mrb[0].mxu0
  %630 = vdwg.mxu0
  %v631 = vmul.f32 %v618, 0.5
  %v632 = vmul.f32 %v623, 0.5
  %v633 = vmul.f32 %v628, 0.5
  %v634 = vtanh.pop %v631
  %v635 = vtanh.pop %v632
  %v636 = vtanh.pop %v633
  %v637 = vmul.f32 %v634, 0.5
  %v638 = vmul.f32 %v635, 0.5
  %v639 = vmul.f32 %v636, 0.5
  %v640 = vadd.f32 %v637, 0.5
  %v641 = vadd.f32 %v638, 0.5
  %v642 = vadd.f32 %v639, 0.5
  %s643 = scalar_lea.vmem %s2, 96
  %v644 = vld [vmem:[%s643] sm:$0xff]
  %v645 = vld [vmem:[%s643 + $0x8] sm:$0xff]
  %v646 = vld [vmem:[%s643 + $0x10] sm:$0xff]
  %s647 = scalar_lea.vmem %s4, 120
  %v648 = vld [vmem:[%s647] sm:$0xff]
  %v649 = vld [vmem:[%s647 + $0x8] sm:$0xff]
  %v650 = vld [vmem:[%s647 + $0x10] sm:$0xff]
  %652 = vset.pattern.permute.xlu0 0
  %653 = vperm.xlu0 %652, %v648
  %v654 = vpop.permute.xlu0 %653
  %657 = vset.pattern.permute.xlu0 0
  %658 = vperm.xlu0 %657, %v649
  %v659 = vpop.permute.xlu0 %658
  %662 = vset.pattern.permute.xlu0 0
  %663 = vperm.xlu0 %662, %v650
  %v664 = vpop.permute.xlu0 %663
  %v667 = vsel %vm169, %v644, 0
  %v670 = vsel %vm169, %v645, 0
  %v673 = vsel %vm169, %v646, 0
  %675 = vmatprep.subr.mxu0 0.0
  %676 = vmatpush1.msra.mxu0 %v640
  %677 = vmatprep.subr.mxu0 0.0
  %678 = vmatpush1.msra.mxu0 %v641
  %679 = vmatprep.subr.mxu0 0.0
  %680 = vmatpush1.msra.mxu0 %v642
  %681 = vmatprep.subr.mxu0 0.0
  %682 = vmatpush1.msra.mxu0 0.0
  %683 = vmatprep.subr.mxu0 0.0
  %684 = vmatpush1.msra.mxu0 0.0
  %685 = vmatprep.subr.mxu0 0.0
  %686 = vmatpush1.msra.mxu0 0.0
  %687 = vmatprep.subr.mxu0 0.0
  %688 = vmatpush1.msra.mxu0 0.0
  %689 = vmatprep.subr.mxu0 0.0
  %690 = vmatpush1.msra.mxu0 0.0
  %691 = vmatprep.subr.mxu0 0.0
  %692 = vmatpush1.msra.mxu0 0.0
  %693 = vmatprep.subr.mxu0 0.0
  %694 = vmatpush1.msra.mxu0 0.0
  %695 = vmatprep.subr.mxu0 0.0
  %696 = vmatpush1.msra.mxu0 0.0
  %697 = vmatprep.subr.mxu0 0.0
  %698 = vmatpush1.msra.mxu0 0.0
  %699 = vmatprep.subr.mxu0 0.0
  %700 = vmatpush1.msra.mxu0 0.0
  %701 = vmatprep.subr.mxu0 0.0
  %702 = vmatpush1.msra.mxu0 0.0
  %703 = vmatprep.subr.mxu0 0.0
  %704 = vmatpush1.msra.mxu0 0.0
  %705 = vmatprep.subr.mxu0 0.0
  %706 = vmatpush1.msra.mxu0 0.0
  %707 = vmatprep.subr.mxu0 0.0
  %708 = vmatpush1.msra.mxu0 0.0
  %709 = vmatprep.subr.mxu0 0.0
  %710 = vmatpush1.msra.mxu0 0.0
  %711 = vmatprep.subr.mxu0 0.0
  %712 = vmatpush1.msra.mxu0 0.0
  %713 = vmatprep.subr.mxu0 0.0
  %714 = vmatpush1.msra.mxu0 0.0
  %715 = vmatprep.subr.mxu0 0.0
  %716 = vmatpush1.msra.mxu0 0.0
  %717 = vmatprep.subr.mxu0 0.0
  %718 = vmatpush1.msra.mxu0 0.0
  %719 = vmatprep.subr.mxu0 0.0
  %720 = vmatpush1.msra.mxu0 0.0
  %721 = vmatprep.subr.mxu0 0.0
  %722 = vmatpush1.msra.mxu0 0.0
  %723 = vmatprep.subr.mxu0 0.0
  %724 = vmatpush1.msra.mxu0 0.0
  %725 = vmatprep.subr.mxu0 0.0
  %726 = vmatpush1.msra.mxu0 0.0
  %727 = vmatprep.subr.mxu0 0.0
  %728 = vmatpush1.msra.mxu0 0.0
  %729 = vmatprep.subr.mxu0 0.0
  %730 = vmatpush1.msra.mxu0 0.0
  %731 = vmatprep.subr.mxu0 0.0
  %732 = vmatpush1.msra.mxu0 0.0
  %733 = vmatprep.subr.mxu0 0.0
  %734 = vmatpush1.msra.mxu0 0.0
  %735 = vmatprep.subr.mxu0 0.0
  %736 = vmatpush1.msra.mxu0 0.0
  %737 = vmatprep.subr.mxu0 0.0
  %738 = vmatpush1.msra.mxu0 0.0
  %739 = vmatprep.mubr.f32.mxu0 0.0
  %740 = vmatmul.mubr.f32.gmra.mrb[0].mxu0 %v667
  %v741 = vpop.f32.mrb[0].mxu0
  %v742 = vadd.f32 %v654, %v741
  %v743 = vpop.f32.mrb[0].mxu0
  %744 = vmatprep.mubr.f32.mxu0 0.0
  %745 = vmatmul.mubr.f32.gmra.mrb[0].mxu0 %v670
  %v746 = vpop.f32.mrb[0].mxu0
  %v747 = vadd.f32 %v659, %v746
  %v748 = vpop.f32.mrb[0].mxu0
  %749 = vmatprep.mubr.f32.mxu0 0.0
  %750 = vmatmul.mubr.f32.gmra.mrb[0].mxu0 %v673
  %v751 = vpop.f32.mrb[0].mxu0
  %v752 = vadd.f32 %v664, %v751
  %v753 = vpop.f32.mrb[0].mxu0
  %754 = vdwg.mxu0
  %v755 = vmul.f32 %v742, 0.5
  %v756 = vmul.f32 %v747, 0.5
  %v757 = vmul.f32 %v752, 0.5
  %v758 = vtanh.pop %v755
  %v759 = vtanh.pop %v756
  %v760 = vtanh.pop %v757
  %v761 = vmul.f32 %v758, 0.5
  %v762 = vmul.f32 %v759, 0.5
  %v763 = vmul.f32 %v760, 0.5
  %v764 = vadd.f32 %v761, 0.5
  %v765 = vadd.f32 %v762, 0.5
  %v766 = vadd.f32 %v763, 0.5
  %v767 = vld [vmem:[%s3] sm:$0xff]
  %v768 = vld [vmem:[%s5] sm:$0xff]
  %770 = vset.pattern.permute.xlu0 0
  %771 = vperm.xlu0 %770, %v768
  %v772 = vpop.permute.xlu0 %771
  %v775 = vsel %vm169, %v767, 0
  %777 = vmatprep.subr.mxu0 0.0
  %778 = vmatpush1.msra.mxu0 %v764
  %779 = vmatprep.subr.mxu0 0.0
  %780 = vmatpush1.msra.mxu0 %v765
  %781 = vmatprep.subr.mxu0 0.0
  %782 = vmatpush1.msra.mxu0 %v766
  %783 = vmatprep.subr.mxu0 0.0
  %784 = vmatpush1.msra.mxu0 0.0
  %785 = vmatprep.subr.mxu0 0.0
  %786 = vmatpush1.msra.mxu0 0.0
  %787 = vmatprep.subr.mxu0 0.0
  %788 = vmatpush1.msra.mxu0 0.0
  %789 = vmatprep.subr.mxu0 0.0
  %790 = vmatpush1.msra.mxu0 0.0
  %791 = vmatprep.subr.mxu0 0.0
  %792 = vmatpush1.msra.mxu0 0.0
  %793 = vmatprep.subr.mxu0 0.0
  %794 = vmatpush1.msra.mxu0 0.0
  %795 = vmatprep.subr.mxu0 0.0
  %796 = vmatpush1.msra.mxu0 0.0
  %797 = vmatprep.subr.mxu0 0.0
  %798 = vmatpush1.msra.mxu0 0.0
  %799 = vmatprep.subr.mxu0 0.0
  %800 = vmatpush1.msra.mxu0 0.0
  %801 = vmatprep.subr.mxu0 0.0
  %802 = vmatpush1.msra.mxu0 0.0
  %803 = vmatprep.subr.mxu0 0.0
  %804 = vmatpush1.msra.mxu0 0.0
  %805 = vmatprep.subr.mxu0 0.0
  %806 = vmatpush1.msra.mxu0 0.0
  %807 = vmatprep.subr.mxu0 0.0
  %808 = vmatpush1.msra.mxu0 0.0
  %809 = vmatprep.subr.mxu0 0.0
  %810 = vmatpush1.msra.mxu0 0.0
  %811 = vmatprep.subr.mxu0 0.0
  %812 = vmatpush1.msra.mxu0 0.0
  %813 = vmatprep.subr.mxu0 0.0
  %814 = vmatpush1.msra.mxu0 0.0
  %815 = vmatprep.subr.mxu0 0.0
  %816 = vmatpush1.msra.mxu0 0.0
  %817 = vmatprep.subr.mxu0 0.0
  %818 = vmatpush1.msra.mxu0 0.0
  %819 = vmatprep.subr.mxu0 0.0
  %820 = vmatpush1.msra.mxu0 0.0
  %821 = vmatprep.subr.mxu0 0.0
  %822 = vmatpush1.msra.mxu0 0.0
  %823 = vmatprep.subr.mxu0 0.0
  %824 = vmatpush1.msra.mxu0 0.0
  %825 = vmatprep.subr.mxu0 0.0
  %826 = vmatpush1.msra.mxu0 0.0
  %827 = vmatprep.subr.mxu0 0.0
  %828 = vmatpush1.msra.mxu0 0.0
  %829 = vmatprep.subr.mxu0 0.0
  %830 = vmatpush1.msra.mxu0 0.0
  %831 = vmatprep.subr.mxu0 0.0
  %832 = vmatpush1.msra.mxu0 0.0
  %833 = vmatprep.subr.mxu0 0.0
  %834 = vmatpush1.msra.mxu0 0.0
  %835 = vmatprep.subr.mxu0 0.0
  %836 = vmatpush1.msra.mxu0 0.0
  %837 = vmatprep.subr.mxu0 0.0
  %838 = vmatpush1.msra.mxu0 0.0
  %839 = vmatprep.subr.mxu0 0.0
  %840 = vmatpush1.msra.mxu0 0.0
  %841 = vmatprep.mubr.f32.mxu0 0.0
  %842 = vmatmul.mubr.f32.gmra.mrb[0].mxu0 %v775
  %v843 = vpop.f32.mrb[0].mxu0
  %v844 = vadd.f32 %v772, %v843
  %v845 = vpop.f32.mrb[0].mxu0
  %846 = vdwg.mxu0
  %847 = vst [vmem:[%s6] sm:$0xff] %v844
  // Predicated region
  $region26: #{deep_sig_net_forward.1} parent=0 // pred_check
    _
  $region27: #{deep_sig_net_forward.1} parent=0 // pred_check_branch
    %849 = sbr.rel (0) target = $region29
  $region28: #{deep_sig_net_forward.1} parent=0 // pred_region
    _
  $region29: #{deep_sig_net_forward.1} parent=0 // pred_fallthru
    _
  // Predicated region
  $region30: #{deep_sig_net_forward.1} parent=0 // pred_check
    _
  $region31: #{deep_sig_net_forward.1} parent=0 // pred_check_branch
    %851 = sbr.rel (0) target = $region33
  $region32: #{deep_sig_net_forward.1} parent=0 // pred_region
    _
  $region33: #{deep_sig_net_forward.1} parent=0 // pred_fallthru
    _

</llo_original>
